<compile_context>
chip_gen: v6e
topology: v6e:2x2x1
jax: 0.10.0
libtpu: 0.0.40
codegen_flags: <defaults>
</compile_context>

<pallas_src>
import functools

import jax
import jax.numpy as jnp
from jax.experimental import pallas as pl
from jax.experimental.pallas import tpu as pltpu


def _dilated_dense_kernel(x_ref, w_ref, b_ref, o_ref, *, H, W, Cin, Cout):
    """Fused dilated 3x3 conv (d=2, pad=2) + bias + ReLU + channel concat.

    x_ref : (BN, Cin, H*W)        VMEM  input, spatial flattened onto lanes
    w_ref : (Cout, Cin*9)         VMEM  conv weights (OIHW flattened per out-channel)
    b_ref : (Cout, 1)             VMEM  bias (sublane-oriented column)
    o_ref : (BN, Cin+Cout, H*W)   VMEM  [x ; relu(conv(x) + b)]
    """
    HW = H * W
    BN = x_ref.shape[0]

    x = x_ref[...]                                   # (BN, Cin, HW)
    # channel-concat pass-through: single store of the first Cin channels
    o_ref[:, :Cin, :] = x

    xf = x.astype(jnp.float32)
    w = w_ref[...]                                   # (Cout, Cin*9), f32
    b = b_ref[...]                                   # (Cout, 1),     f32

    # flattened pixel index / x-coordinate used for border masking (no jnp.pad)
    pidx = jax.lax.broadcasted_iota(jnp.int32, (1, 1, HW), 2)
    if (W & (W - 1)) == 0:
        xcoord = pidx & (W - 1)
    else:
        xcoord = pidx % W

    # single packed accumulator: Cout on the sublane axis (Cout=8 -> fully dense vregs)
    acc = jnp.zeros((BN, Cout, HW), jnp.float32)

    for ky in range(3):
        dy = 2 * (ky - 1)                            # dilation-2 offsets: {-2, 0, +2}
        for kx in range(3):
            dx = 2 * (kx - 1)
            tap = ky * 3 + kx
            s = dy * W + dx                          # out[p] += w * in[p + s]

            # one XLU rotation per tap on the stacked (BN, Cin, HW) planes
            src = xf
            if s != 0:
                src = pltpu.roll(xf, (-s) % HW, axis=2)

            # source-pixel validity (replaces explicit zero padding); the roll wraps
            # around the flattened H*W axis, so every nonzero-shift tap keeps its mask.
            valid = None
            if dy < 0:
                valid = pidx >= (-dy) * W
            elif dy > 0:
                valid = pidx < (H - dy) * W
            if dx < 0:
                vx = xcoord >= -dx
                valid = vx if valid is None else jnp.logical_and(valid, vx)
            elif dx > 0:
                vx = xcoord < (W - dx)
                valid = vx if valid is None else jnp.logical_and(valid, vx)
            if valid is not None:
                src = jnp.where(valid, src, 0.0)     # one select per tap

            # per (tap, ci): one vector FMA on the packed accumulator
            for ci in range(Cin):
                col = ci * 9 + tap
                wcol = w[:, col:col + 1]             # (Cout, 1) sublane weight column
                acc = acc + wcol[None, :, :] * src[:, ci:ci + 1, :]

    out = jnp.maximum(acc + b[None, :, :], 0.0)      # bias + ReLU
    o_ref[:, Cin:, :] = out.astype(o_ref.dtype)      # single coalesced store


def _largest_divisor_at_most(n, cap):
    cap = int(max(1, min(n, cap)))
    for d in range(cap, 0, -1):
        if n % d == 0:
            return d
    return 1


def make_dilation_dense_forward(x_nchw, weight_oihw, bias, *, batch_block=None,
                                vmem_block_budget=10 << 20):
    """Matches PyTorch make_dilation_dense.forward.

    x_nchw      : (N, Cin, H, W)
    weight_oihw : (Cout, Cin, 3, 3)   (PyTorch conv weight layout)
    bias        : (Cout,)
    returns     : (N, Cin + Cout, H, W)
    """
    N, Cin, H, W = x_nchw.shape
    Cout = weight_oihw.shape[0]
    HW = H * W
    elem = jnp.dtype(x_nchw.dtype).itemsize

    x_flat = x_nchw.reshape(N, Cin, HW)                         # free reshape of NCHW
    w_mat = weight_oihw.reshape(Cout, Cin * 9).astype(jnp.float32)
    b_col = bias.reshape(Cout, 1).astype(jnp.float32)

    # Honest per-image VMEM cost: double-buffered in+out blocks + f32 working set
    # (xf + rolled + masked temps ~ 3*Cin planes, accumulator + epilogue ~ 2*Cout planes).
    per_image_bytes = (2 * (2 * Cin + Cout) * HW * elem
                       + (3 * Cin + 2 * Cout) * HW * 4)

    if batch_block is None:
        batch_block = _largest_divisor_at_most(
            N, max(1, vmem_block_budget // per_image_bytes))
        # Keep grid >= 2 when possible so dimension_semantics=("parallel",) can shard
        # the batch across v7x's 2 TensorCores; negligible overhead on v5e/v6e.
        if N >= 2:
            batch_block = min(batch_block, _largest_divisor_at_most(N, N // 2))
    batch_block = _largest_divisor_at_most(N, batch_block)
    grid = (N // batch_block,)

    vmem_limit = int(min(48 << 20, max(32 << 20, 2 * batch_block * per_image_bytes)))

    kernel = functools.partial(_dilated_dense_kernel, H=H, W=W, Cin=Cin, Cout=Cout)

    out = pl.pallas_call(
        kernel,
        out_shape=jax.ShapeDtypeStruct((N, Cin + Cout, HW), x_nchw.dtype),
        grid=grid,
        in_specs=[
            pl.BlockSpec((batch_block, Cin, HW), lambda i: (i, 0, 0)),
            pl.BlockSpec((Cout, Cin * 9), lambda i: (0, 0)),    # weights, resident VMEM
            pl.BlockSpec((Cout, 1), lambda i: (0, 0)),          # bias,    resident VMEM
        ],
        out_specs=pl.BlockSpec((batch_block, Cin + Cout, HW), lambda i: (i, 0, 0)),
        compiler_params=pltpu.CompilerParams(
            dimension_semantics=("parallel",),
            vmem_limit_bytes=vmem_limit,
        ),
    )(x_flat, w_mat, b_col)

    return out.reshape(N, Cin + Cout, H, W)


if __name__ == "__main__":
    # Module config: nChannels=4, growthRate=8, kernel_size=3
    nChannels, growthRate, k = 4, 8, 3
    N, H, W = 2, 16, 16

    key = jax.random.PRNGKey(0)
    kx_, kw_, kb_ = jax.random.split(key, 3)
    x = jax.random.normal(kx_, (N, nChannels, H, W), dtype=jnp.float32)
    weight = jax.random.normal(kw_, (growthRate, nChannels, k, k), dtype=jnp.float32) * 0.1
    bias = jax.random.normal(kb_, (growthRate,), dtype=jnp.float32) * 0.1

    out = make_dilation_dense_forward(x, weight, bias)
    out = jax.block_until_ready(out)

    # reference: XLA dilated conv + relu + concat (same semantics as the PyTorch module)
    ref_conv = jax.lax.conv_general_dilated(
        x, weight,
        window_strides=(1, 1),
        padding=((2, 2), (2, 2)),
        rhs_dilation=(2, 2),
        dimension_numbers=("NCHW", "OIHW", "NCHW"),
    ) + bias.reshape(1, -1, 1, 1)
    ref = jnp.concatenate([x, jax.nn.relu(ref_conv)], axis=1)

    assert out.shape == (N, nChannels + growthRate, H, W), out.shape
    assert jnp.allclose(out, ref, atol=1e-4, rtol=1e-4), float(jnp.max(jnp.abs(out - ref)))

    print("KERNEL_OK")
</pallas_src>

<mosaic_0001>
module attributes {stable_mosaic.version = 11 : i64} {
  func.func @_dilated_dense_kernel(%arg0: i32, %arg1: memref<1x4x256xf32, #tpu.memory_space<vmem>>, %arg2: memref<8x36xf32, #tpu.memory_space<vmem>>, %arg3: memref<8x1xf32, #tpu.memory_space<vmem>>, %arg4: memref<1x12x256xf32, #tpu.memory_space<vmem>>) attributes {dimension_semantics = [#tpu.dimension_semantics<parallel>], iteration_bounds = array<i64: 2>, scalar_prefetch = 0 : i64, scratch_operands = 0 : i64, tpu.core_type = #tpu.core_type<tc>, window_params = [{transform_indices = @transform_0, window_bounds = array<i64: 1, 4, 256>}, {pipeline_mode = #tpu.pipeline_mode<synchronous>, transform_indices = @transform_1, window_bounds = array<i64: 8, 36>}, {pipeline_mode = #tpu.pipeline_mode<synchronous>, transform_indices = @transform_2, window_bounds = array<i64: 8, 1>}, {transform_indices = @transform_3, window_bounds = array<i64: 1, 12, 256>}]} {
    %c0 = arith.constant 0 : index
    %c0_0 = arith.constant 0 : index
    %c0_1 = arith.constant 0 : index
    %0 = vector.load %arg1[%c0, %c0_0, %c0_1] : memref<1x4x256xf32, #tpu.memory_space<vmem>>, vector<1x4x256xf32>
    %c0_2 = arith.constant 0 : index
    %c0_3 = arith.constant 0 : index
    %c0_4 = arith.constant 0 : index
    %1 = vector.load %arg4[%c0_2, %c0_3, %c0_4] : memref<1x12x256xf32, #tpu.memory_space<vmem>>, vector<1x4x256xf32>
    tpu.vector_store %arg4[%c0_2, %c0_3, %c0_4], %0 {strides = array<i32>} : memref<1x12x256xf32, #tpu.memory_space<vmem>>, vector<1x4x256xf32>,
    %c0_5 = arith.constant 0 : index
    %c0_6 = arith.constant 0 : index
    %2 = vector.load %arg2[%c0_5, %c0_6] : memref<8x36xf32, #tpu.memory_space<vmem>>, vector<8x36xf32>
    %c0_7 = arith.constant 0 : index
    %c0_8 = arith.constant 0 : index
    %3 = vector.load %arg3[%c0_7, %c0_8] : memref<8x1xf32, #tpu.memory_space<vmem>>, vector<8x1xf32>
    %4 = tpu.iota {dimensions = array<i32: 2>} : vector<1x1x256xi32>
    %c15_i32 = arith.constant 15 : i32
    %5 = vector.broadcast %c15_i32 : i32 to vector<1x1x256xi32>
    %6 = arith.andi %4, %5 : vector<1x1x256xi32>
    %cst = arith.constant 0.000000e+00 : f32
    %7 = vector.broadcast %cst : f32 to vector<1x8x256xf32>
    %c34_i32 = arith.constant 34 : i32
    %8 = tpu.dynamic_rotate %0 by %c34_i32 dim 2 : vector<1x4x256xf32>, i32 -> vector<1x4x256xf32>
    %c32_i32 = arith.constant 32 : i32
    %9 = vector.broadcast %c32_i32 : i32 to vector<1x1x256xi32>
    %10 = arith.cmpi sge, %4, %9 : vector<1x1x256xi32>
    %c2_i32 = arith.constant 2 : i32
    %11 = vector.broadcast %c2_i32 : i32 to vector<1x1x256xi32>
    %12 = arith.cmpi sge, %6, %11 : vector<1x1x256xi32>
    %13 = arith.andi %10, %12 : vector<1x1x256xi1>
    %cst_9 = arith.constant 0.000000e+00 : f32
    %14 = vector.shape_cast %13 : vector<1x1x256xi1> to vector<1x1x256xi1>
    %15 = vector.broadcast %14 : vector<1x1x256xi1> to vector<1x4x256xi1>
    %16 = vector.broadcast %cst_9 : f32 to vector<1x4x256xf32>
    %17 = arith.select %15, %8, %16 : vector<1x4x256xi1>, vector<1x4x256xf32>
    %18 = vector.extract_strided_slice %2 {offsets = [0, 0], sizes = [8, 1], strides = [1, 1]} : vector<8x36xf32> to vector<8x1xf32>
    %19 = vector.shape_cast %18 : vector<8x1xf32> to vector<1x8x1xf32>
    %20 = vector.extract_strided_slice %17 {offsets = [0, 0, 0], sizes = [1, 1, 256], strides = [1, 1, 1]} : vector<1x4x256xf32> to vector<1x1x256xf32>
    %21 = vector.broadcast %19 : vector<1x8x1xf32> to vector<1x8x256xf32>
    %22 = vector.broadcast %20 : vector<1x1x256xf32> to vector<1x8x256xf32>
    %23 = arith.mulf %21, %22 : vector<1x8x256xf32>
    %24 = arith.addf %7, %23 : vector<1x8x256xf32>
    %25 = vector.extract_strided_slice %2 {offsets = [0, 9], sizes = [8, 1], strides = [1, 1]} : vector<8x36xf32> to vector<8x1xf32>
    %26 = vector.shape_cast %25 : vector<8x1xf32> to vector<1x8x1xf32>
    %27 = vector.extract_strided_slice %17 {offsets = [0, 1, 0], sizes = [1, 1, 256], strides = [1, 1, 1]} : vector<1x4x256xf32> to vector<1x1x256xf32>
    %28 = vector.broadcast %26 : vector<1x8x1xf32> to vector<1x8x256xf32>
    %29 = vector.broadcast %27 : vector<1x1x256xf32> to vector<1x8x256xf32>
    %30 = arith.mulf %28, %29 : vector<1x8x256xf32>
    %31 = arith.addf %24, %30 : vector<1x8x256xf32>
    %32 = vector.extract_strided_slice %2 {offsets = [0, 18], sizes = [8, 1], strides = [1, 1]} : vector<8x36xf32> to vector<8x1xf32>
    %33 = vector.shape_cast %32 : vector<8x1xf32> to vector<1x8x1xf32>
    %34 = vector.extract_strided_slice %17 {offsets = [0, 2, 0], sizes = [1, 1, 256], strides = [1, 1, 1]} : vector<1x4x256xf32> to vector<1x1x256xf32>
    %35 = vector.broadcast %33 : vector<1x8x1xf32> to vector<1x8x256xf32>
    %36 = vector.broadcast %34 : vector<1x1x256xf32> to vector<1x8x256xf32>
    %37 = arith.mulf %35, %36 : vector<1x8x256xf32>
    %38 = arith.addf %31, %37 : vector<1x8x256xf32>
    %39 = vector.extract_strided_slice %2 {offsets = [0, 27], sizes = [8, 1], strides = [1, 1]} : vector<8x36xf32> to vector<8x1xf32>
    %40 = vector.shape_cast %39 : vector<8x1xf32> to vector<1x8x1xf32>
    %41 = vector.extract_strided_slice %17 {offsets = [0, 3, 0], sizes = [1, 1, 256], strides = [1, 1, 1]} : vector<1x4x256xf32> to vector<1x1x256xf32>
    %42 = vector.broadcast %40 : vector<1x8x1xf32> to vector<1x8x256xf32>
    %43 = vector.broadcast %41 : vector<1x1x256xf32> to vector<1x8x256xf32>
    %44 = arith.mulf %42, %43 : vector<1x8x256xf32>
    %45 = arith.addf %38, %44 : vector<1x8x256xf32>
    %c32_i32_10 = arith.constant 32 : i32
    %46 = tpu.dynamic_rotate %0 by %c32_i32_10 dim 2 : vector<1x4x256xf32>, i32 -> vector<1x4x256xf32>
    %c32_i32_11 = arith.constant 32 : i32
    %47 = vector.broadcast %c32_i32_11 : i32 to vector<1x1x256xi32>
    %48 = arith.cmpi sge, %4, %47 : vector<1x1x256xi32>
    %cst_12 = arith.constant 0.000000e+00 : f32
    %49 = vector.shape_cast %48 : vector<1x1x256xi1> to vector<1x1x256xi1>
    %50 = vector.broadcast %49 : vector<1x1x256xi1> to vector<1x4x256xi1>
    %51 = vector.broadcast %cst_12 : f32 to vector<1x4x256xf32>
    %52 = arith.select %50, %46, %51 : vector<1x4x256xi1>, vector<1x4x256xf32>
    %53 = vector.extract_strided_slice %2 {offsets = [0, 1], sizes = [8, 1], strides = [1, 1]} : vector<8x36xf32> to vector<8x1xf32>
    %54 = vector.shape_cast %53 : vector<8x1xf32> to vector<1x8x1xf32>
    %55 = vector.extract_strided_slice %52 {offsets = [0, 0, 0], sizes = [1, 1, 256], strides = [1, 1, 1]} : vector<1x4x256xf32> to vector<1x1x256xf32>
    %56 = vector.broadcast %54 : vector<1x8x1xf32> to vector<1x8x256xf32>
    %57 = vector.broadcast %55 : vector<1x1x256xf32> to vector<1x8x256xf32>
    %58 = arith.mulf %56, %57 : vector<1x8x256xf32>
    %59 = arith.addf %45, %58 : vector<1x8x256xf32>
    %60 = vector.extract_strided_slice %2 {offsets = [0, 10], sizes = [8, 1], strides = [1, 1]} : vector<8x36xf32> to vector<8x1xf32>
    %61 = vector.shape_cast %60 : vector<8x1xf32> to vector<1x8x1xf32>
    %62 = vector.extract_strided_slice %52 {offsets = [0, 1, 0], sizes = [1, 1, 256], strides = [1, 1, 1]} : vector<1x4x256xf32> to vector<1x1x256xf32>
    %63 = vector.broadcast %61 : vector<1x8x1xf32> to vector<1x8x256xf32>
    %64 = vector.broadcast %62 : vector<1x1x256xf32> to vector<1x8x256xf32>
    %65 = arith.mulf %63, %64 : vector<1x8x256xf32>
    %66 = arith.addf %59, %65 : vector<1x8x256xf32>
    %67 = vector.extract_strided_slice %2 {offsets = [0, 19], sizes = [8, 1], strides = [1, 1]} : vector<8x36xf32> to vector<8x1xf32>
    %68 = vector.shape_cast %67 : vector<8x1xf32> to vector<1x8x1xf32>
    %69 = vector.extract_strided_slice %52 {offsets = [0, 2, 0], sizes = [1, 1, 256], strides = [1, 1, 1]} : vector<1x4x256xf32> to vector<1x1x256xf32>
    %70 = vector.broadcast %68 : vector<1x8x1xf32> to vector<1x8x256xf32>
    %71 = vector.broadcast %69 : vector<1x1x256xf32> to vector<1x8x256xf32>
    %72 = arith.mulf %70, %71 : vector<1x8x256xf32>
    %73 = arith.addf %66, %72 : vector<1x8x256xf32>
    %74 = vector.extract_strided_slice %2 {offsets = [0, 28], sizes = [8, 1], strides = [1, 1]} : vector<8x36xf32> to vector<8x1xf32>
    %75 = vector.shape_cast %74 : vector<8x1xf32> to vector<1x8x1xf32>
    %76 = vector.extract_strided_slice %52 {offsets = [0, 3, 0], sizes = [1, 1, 256], strides = [1, 1, 1]} : vector<1x4x256xf32> to vector<1x1x256xf32>
    %77 = vector.broadcast %75 : vector<1x8x1xf32> to vector<1x8x256xf32>
    %78 = vector.broadcast %76 : vector<1x1x256xf32> to vector<1x8x256xf32>
    %79 = arith.mulf %77, %78 : vector<1x8x256xf32>
    %80 = arith.addf %73, %79 : vector<1x8x256xf32>
    %c30_i32 = arith.constant 30 : i32
    %81 = tpu.dynamic_rotate %0 by %c30_i32 dim 2 : vector<1x4x256xf32>, i32 -> vector<1x4x256xf32>
    %c32_i32_13 = arith.constant 32 : i32
    %82 = vector.broadcast %c32_i32_13 : i32 to vector<1x1x256xi32>
    %83 = arith.cmpi sge, %4, %82 : vector<1x1x256xi32>
    %c14_i32 = arith.constant 14 : i32
    %84 = vector.broadcast %c14_i32 : i32 to vector<1x1x256xi32>
    %85 = arith.cmpi slt, %6, %84 : vector<1x1x256xi32>
    %86 = arith.andi %83, %85 : vector<1x1x256xi1>
    %cst_14 = arith.constant 0.000000e+00 : f32
    %87 = vector.shape_cast %86 : vector<1x1x256xi1> to vector<1x1x256xi1>
    %88 = vector.broadcast %87 : vector<1x1x256xi1> to vector<1x4x256xi1>
    %89 = vector.broadcast %cst_14 : f32 to vector<1x4x256xf32>
    %90 = arith.select %88, %81, %89 : vector<1x4x256xi1>, vector<1x4x256xf32>
    %91 = vector.extract_strided_slice %2 {offsets = [0, 2], sizes = [8, 1], strides = [1, 1]} : vector<8x36xf32> to vector<8x1xf32>
    %92 = vector.shape_cast %91 : vector<8x1xf32> to vector<1x8x1xf32>
    %93 = vector.extract_strided_slice %90 {offsets = [0, 0, 0], sizes = [1, 1, 256], strides = [1, 1, 1]} : vector<1x4x256xf32> to vector<1x1x256xf32>
    %94 = vector.broadcast %92 : vector<1x8x1xf32> to vector<1x8x256xf32>
    %95 = vector.broadcast %93 : vector<1x1x256xf32> to vector<1x8x256xf32>
    %96 = arith.mulf %94, %95 : vector<1x8x256xf32>
    %97 = arith.addf %80, %96 : vector<1x8x256xf32>
    %98 = vector.extract_strided_slice %2 {offsets = [0, 11], sizes = [8, 1], strides = [1, 1]} : vector<8x36xf32> to vector<8x1xf32>
    %99 = vector.shape_cast %98 : vector<8x1xf32> to vector<1x8x1xf32>
    %100 = vector.extract_strided_slice %90 {offsets = [0, 1, 0], sizes = [1, 1, 256], strides = [1, 1, 1]} : vector<1x4x256xf32> to vector<1x1x256xf32>
    %101 = vector.broadcast %99 : vector<1x8x1xf32> to vector<1x8x256xf32>
    %102 = vector.broadcast %100 : vector<1x1x256xf32> to vector<1x8x256xf32>
    %103 = arith.mulf %101, %102 : vector<1x8x256xf32>
    %104 = arith.addf %97, %103 : vector<1x8x256xf32>
    %105 = vector.extract_strided_slice %2 {offsets = [0, 20], sizes = [8, 1], strides = [1, 1]} : vector<8x36xf32> to vector<8x1xf32>
    %106 = vector.shape_cast %105 : vector<8x1xf32> to vector<1x8x1xf32>
    %107 = vector.extract_strided_slice %90 {offsets = [0, 2, 0], sizes = [1, 1, 256], strides = [1, 1, 1]} : vector<1x4x256xf32> to vector<1x1x256xf32>
    %108 = vector.broadcast %106 : vector<1x8x1xf32> to vector<1x8x256xf32>
    %109 = vector.broadcast %107 : vector<1x1x256xf32> to vector<1x8x256xf32>
    %110 = arith.mulf %108, %109 : vector<1x8x256xf32>
    %111 = arith.addf %104, %110 : vector<1x8x256xf32>
    %112 = vector.extract_strided_slice %2 {offsets = [0, 29], sizes = [8, 1], strides = [1, 1]} : vector<8x36xf32> to vector<8x1xf32>
    %113 = vector.shape_cast %112 : vector<8x1xf32> to vector<1x8x1xf32>
    %114 = vector.extract_strided_slice %90 {offsets = [0, 3, 0], sizes = [1, 1, 256], strides = [1, 1, 1]} : vector<1x4x256xf32> to vector<1x1x256xf32>
    %115 = vector.broadcast %113 : vector<1x8x1xf32> to vector<1x8x256xf32>
    %116 = vector.broadcast %114 : vector<1x1x256xf32> to vector<1x8x256xf32>
    %117 = arith.mulf %115, %116 : vector<1x8x256xf32>
    %118 = arith.addf %111, %117 : vector<1x8x256xf32>
    %c2_i32_15 = arith.constant 2 : i32
    %119 = tpu.dynamic_rotate %0 by %c2_i32_15 dim 2 : vector<1x4x256xf32>, i32 -> vector<1x4x256xf32>
    %c2_i32_16 = arith.constant 2 : i32
    %120 = vector.broadcast %c2_i32_16 : i32 to vector<1x1x256xi32>
    %121 = arith.cmpi sge, %6, %120 : vector<1x1x256xi32>
    %cst_17 = arith.constant 0.000000e+00 : f32
    %122 = vector.shape_cast %121 : vector<1x1x256xi1> to vector<1x1x256xi1>
    %123 = vector.broadcast %122 : vector<1x1x256xi1> to vector<1x4x256xi1>
    %124 = vector.broadcast %cst_17 : f32 to vector<1x4x256xf32>
    %125 = arith.select %123, %119, %124 : vector<1x4x256xi1>, vector<1x4x256xf32>
    %126 = vector.extract_strided_slice %2 {offsets = [0, 3], sizes = [8, 1], strides = [1, 1]} : vector<8x36xf32> to vector<8x1xf32>
    %127 = vector.shape_cast %126 : vector<8x1xf32> to vector<1x8x1xf32>
    %128 = vector.extract_strided_slice %125 {offsets = [0, 0, 0], sizes = [1, 1, 256], strides = [1, 1, 1]} : vector<1x4x256xf32> to vector<1x1x256xf32>
    %129 = vector.broadcast %127 : vector<1x8x1xf32> to vector<1x8x256xf32>
    %130 = vector.broadcast %128 : vector<1x1x256xf32> to vector<1x8x256xf32>
    %131 = arith.mulf %129, %130 : vector<1x8x256xf32>
    %132 = arith.addf %118, %131 : vector<1x8x256xf32>
    %133 = vector.extract_strided_slice %2 {offsets = [0, 12], sizes = [8, 1], strides = [1, 1]} : vector<8x36xf32> to vector<8x1xf32>
    %134 = vector.shape_cast %133 : vector<8x1xf32> to vector<1x8x1xf32>
    %135 = vector.extract_strided_slice %125 {offsets = [0, 1, 0], sizes = [1, 1, 256], strides = [1, 1, 1]} : vector<1x4x256xf32> to vector<1x1x256xf32>
    %136 = vector.broadcast %134 : vector<1x8x1xf32> to vector<1x8x256xf32>
    %137 = vector.broadcast %135 : vector<1x1x256xf32> to vector<1x8x256xf32>
    %138 = arith.mulf %136, %137 : vector<1x8x256xf32>
    %139 = arith.addf %132, %138 : vector<1x8x256xf32>
    %140 = vector.extract_strided_slice %2 {offsets = [0, 21], sizes = [8, 1], strides = [1, 1]} : vector<8x36xf32> to vector<8x1xf32>
    %141 = vector.shape_cast %140 : vector<8x1xf32> to vector<1x8x1xf32>
    %142 = vector.extract_strided_slice %125 {offsets = [0, 2, 0], sizes = [1, 1, 256], strides = [1, 1, 1]} : vector<1x4x256xf32> to vector<1x1x256xf32>
    %143 = vector.broadcast %141 : vector<1x8x1xf32> to vector<1x8x256xf32>
    %144 = vector.broadcast %142 : vector<1x1x256xf32> to vector<1x8x256xf32>
    %145 = arith.mulf %143, %144 : vector<1x8x256xf32>
    %146 = arith.addf %139, %145 : vector<1x8x256xf32>
    %147 = vector.extract_strided_slice %2 {offsets = [0, 30], sizes = [8, 1], strides = [1, 1]} : vector<8x36xf32> to vector<8x1xf32>
    %148 = vector.shape_cast %147 : vector<8x1xf32> to vector<1x8x1xf32>
    %149 = vector.extract_strided_slice %125 {offsets = [0, 3, 0], sizes = [1, 1, 256], strides = [1, 1, 1]} : vector<1x4x256xf32> to vector<1x1x256xf32>
    %150 = vector.broadcast %148 : vector<1x8x1xf32> to vector<1x8x256xf32>
    %151 = vector.broadcast %149 : vector<1x1x256xf32> to vector<1x8x256xf32>
    %152 = arith.mulf %150, %151 : vector<1x8x256xf32>
    %153 = arith.addf %146, %152 : vector<1x8x256xf32>
    %154 = vector.extract_strided_slice %2 {offsets = [0, 4], sizes = [8, 1], strides = [1, 1]} : vector<8x36xf32> to vector<8x1xf32>
    %155 = vector.shape_cast %154 : vector<8x1xf32> to vector<1x8x1xf32>
    %156 = vector.extract_strided_slice %0 {offsets = [0, 0, 0], sizes = [1, 1, 256], strides = [1, 1, 1]} : vector<1x4x256xf32> to vector<1x1x256xf32>
    %157 = vector.broadcast %155 : vector<1x8x1xf32> to vector<1x8x256xf32>
    %158 = vector.broadcast %156 : vector<1x1x256xf32> to vector<1x8x256xf32>
    %159 = arith.mulf %157, %158 : vector<1x8x256xf32>
    %160 = arith.addf %153, %159 : vector<1x8x256xf32>
    %161 = vector.extract_strided_slice %2 {offsets = [0, 13], sizes = [8, 1], strides = [1, 1]} : vector<8x36xf32> to vector<8x1xf32>
    %162 = vector.shape_cast %161 : vector<8x1xf32> to vector<1x8x1xf32>
    %163 = vector.extract_strided_slice %0 {offsets = [0, 1, 0], sizes = [1, 1, 256], strides = [1, 1, 1]} : vector<1x4x256xf32> to vector<1x1x256xf32>
    %164 = vector.broadcast %162 : vector<1x8x1xf32> to vector<1x8x256xf32>
    %165 = vector.broadcast %163 : vector<1x1x256xf32> to vector<1x8x256xf32>
    %166 = arith.mulf %164, %165 : vector<1x8x256xf32>
    %167 = arith.addf %160, %166 : vector<1x8x256xf32>
    %168 = vector.extract_strided_slice %2 {offsets = [0, 22], sizes = [8, 1], strides = [1, 1]} : vector<8x36xf32> to vector<8x1xf32>
    %169 = vector.shape_cast %168 : vector<8x1xf32> to vector<1x8x1xf32>
    %170 = vector.extract_strided_slice %0 {offsets = [0, 2, 0], sizes = [1, 1, 256], strides = [1, 1, 1]} : vector<1x4x256xf32> to vector<1x1x256xf32>
    %171 = vector.broadcast %169 : vector<1x8x1xf32> to vector<1x8x256xf32>
    %172 = vector.broadcast %170 : vector<1x1x256xf32> to vector<1x8x256xf32>
    %173 = arith.mulf %171, %172 : vector<1x8x256xf32>
    %174 = arith.addf %167, %173 : vector<1x8x256xf32>
    %175 = vector.extract_strided_slice %2 {offsets = [0, 31], sizes = [8, 1], strides = [1, 1]} : vector<8x36xf32> to vector<8x1xf32>
    %176 = vector.shape_cast %175 : vector<8x1xf32> to vector<1x8x1xf32>
    %177 = vector.extract_strided_slice %0 {offsets = [0, 3, 0], sizes = [1, 1, 256], strides = [1, 1, 1]} : vector<1x4x256xf32> to vector<1x1x256xf32>
    %178 = vector.broadcast %176 : vector<1x8x1xf32> to vector<1x8x256xf32>
    %179 = vector.broadcast %177 : vector<1x1x256xf32> to vector<1x8x256xf32>
    %180 = arith.mulf %178, %179 : vector<1x8x256xf32>
    %181 = arith.addf %174, %180 : vector<1x8x256xf32>
    %c254_i32 = arith.constant 254 : i32
    %182 = tpu.dynamic_rotate %0 by %c254_i32 dim 2 : vector<1x4x256xf32>, i32 -> vector<1x4x256xf32>
    %c14_i32_18 = arith.constant 14 : i32
    %183 = vector.broadcast %c14_i32_18 : i32 to vector<1x1x256xi32>
    %184 = arith.cmpi slt, %6, %183 : vector<1x1x256xi32>
    %cst_19 = arith.constant 0.000000e+00 : f32
    %185 = vector.shape_cast %184 : vector<1x1x256xi1> to vector<1x1x256xi1>
    %186 = vector.broadcast %185 : vector<1x1x256xi1> to vector<1x4x256xi1>
    %187 = vector.broadcast %cst_19 : f32 to vector<1x4x256xf32>
    %188 = arith.select %186, %182, %187 : vector<1x4x256xi1>, vector<1x4x256xf32>
    %189 = vector.extract_strided_slice %2 {offsets = [0, 5], sizes = [8, 1], strides = [1, 1]} : vector<8x36xf32> to vector<8x1xf32>
    %190 = vector.shape_cast %189 : vector<8x1xf32> to vector<1x8x1xf32>
    %191 = vector.extract_strided_slice %188 {offsets = [0, 0, 0], sizes = [1, 1, 256], strides = [1, 1, 1]} : vector<1x4x256xf32> to vector<1x1x256xf32>
    %192 = vector.broadcast %190 : vector<1x8x1xf32> to vector<1x8x256xf32>
    %193 = vector.broadcast %191 : vector<1x1x256xf32> to vector<1x8x256xf32>
    %194 = arith.mulf %192, %193 : vector<1x8x256xf32>
    %195 = arith.addf %181, %194 : vector<1x8x256xf32>
    %196 = vector.extract_strided_slice %2 {offsets = [0, 14], sizes = [8, 1], strides = [1, 1]} : vector<8x36xf32> to vector<8x1xf32>
    %197 = vector.shape_cast %196 : vector<8x1xf32> to vector<1x8x1xf32>
    %198 = vector.extract_strided_slice %188 {offsets = [0, 1, 0], sizes = [1, 1, 256], strides = [1, 1, 1]} : vector<1x4x256xf32> to vector<1x1x256xf32>
    %199 = vector.broadcast %197 : vector<1x8x1xf32> to vector<1x8x256xf32>
    %200 = vector.broadcast %198 : vector<1x1x256xf32> to vector<1x8x256xf32>
    %201 = arith.mulf %199, %200 : vector<1x8x256xf32>
    %202 = arith.addf %195, %201 : vector<1x8x256xf32>
    %203 = vector.extract_strided_slice %2 {offsets = [0, 23], sizes = [8, 1], strides = [1, 1]} : vector<8x36xf32> to vector<8x1xf32>
    %204 = vector.shape_cast %203 : vector<8x1xf32> to vector<1x8x1xf32>
    %205 = vector.extract_strided_slice %188 {offsets = [0, 2, 0], sizes = [1, 1, 256], strides = [1, 1, 1]} : vector<1x4x256xf32> to vector<1x1x256xf32>
    %206 = vector.broadcast %204 : vector<1x8x1xf32> to vector<1x8x256xf32>
    %207 = vector.broadcast %205 : vector<1x1x256xf32> to vector<1x8x256xf32>
    %208 = arith.mulf %206, %207 : vector<1x8x256xf32>
    %209 = arith.addf %202, %208 : vector<1x8x256xf32>
    %210 = vector.extract_strided_slice %2 {offsets = [0, 32], sizes = [8, 1], strides = [1, 1]} : vector<8x36xf32> to vector<8x1xf32>
    %211 = vector.shape_cast %210 : vector<8x1xf32> to vector<1x8x1xf32>
    %212 = vector.extract_strided_slice %188 {offsets = [0, 3, 0], sizes = [1, 1, 256], strides = [1, 1, 1]} : vector<1x4x256xf32> to vector<1x1x256xf32>
    %213 = vector.broadcast %211 : vector<1x8x1xf32> to vector<1x8x256xf32>
    %214 = vector.broadcast %212 : vector<1x1x256xf32> to vector<1x8x256xf32>
    %215 = arith.mulf %213, %214 : vector<1x8x256xf32>
    %216 = arith.addf %209, %215 : vector<1x8x256xf32>
    %c226_i32 = arith.constant 226 : i32
    %217 = tpu.dynamic_rotate %0 by %c226_i32 dim 2 : vector<1x4x256xf32>, i32 -> vector<1x4x256xf32>
    %c224_i32 = arith.constant 224 : i32
    %218 = vector.broadcast %c224_i32 : i32 to vector<1x1x256xi32>
    %219 = arith.cmpi slt, %4, %218 : vector<1x1x256xi32>
    %c2_i32_20 = arith.constant 2 : i32
    %220 = vector.broadcast %c2_i32_20 : i32 to vector<1x1x256xi32>
    %221 = arith.cmpi sge, %6, %220 : vector<1x1x256xi32>
    %222 = arith.andi %219, %221 : vector<1x1x256xi1>
    %cst_21 = arith.constant 0.000000e+00 : f32
    %223 = vector.shape_cast %222 : vector<1x1x256xi1> to vector<1x1x256xi1>
    %224 = vector.broadcast %223 : vector<1x1x256xi1> to vector<1x4x256xi1>
    %225 = vector.broadcast %cst_21 : f32 to vector<1x4x256xf32>
    %226 = arith.select %224, %217, %225 : vector<1x4x256xi1>, vector<1x4x256xf32>
    %227 = vector.extract_strided_slice %2 {offsets = [0, 6], sizes = [8, 1], strides = [1, 1]} : vector<8x36xf32> to vector<8x1xf32>
    %228 = vector.shape_cast %227 : vector<8x1xf32> to vector<1x8x1xf32>
    %229 = vector.extract_strided_slice %226 {offsets = [0, 0, 0], sizes = [1, 1, 256], strides = [1, 1, 1]} : vector<1x4x256xf32> to vector<1x1x256xf32>
    %230 = vector.broadcast %228 : vector<1x8x1xf32> to vector<1x8x256xf32>
    %231 = vector.broadcast %229 : vector<1x1x256xf32> to vector<1x8x256xf32>
    %232 = arith.mulf %230, %231 : vector<1x8x256xf32>
    %233 = arith.addf %216, %232 : vector<1x8x256xf32>
    %234 = vector.extract_strided_slice %2 {offsets = [0, 15], sizes = [8, 1], strides = [1, 1]} : vector<8x36xf32> to vector<8x1xf32>
    %235 = vector.shape_cast %234 : vector<8x1xf32> to vector<1x8x1xf32>
    %236 = vector.extract_strided_slice %226 {offsets = [0, 1, 0], sizes = [1, 1, 256], strides = [1, 1, 1]} : vector<1x4x256xf32> to vector<1x1x256xf32>
    %237 = vector.broadcast %235 : vector<1x8x1xf32> to vector<1x8x256xf32>
    %238 = vector.broadcast %236 : vector<1x1x256xf32> to vector<1x8x256xf32>
    %239 = arith.mulf %237, %238 : vector<1x8x256xf32>
    %240 = arith.addf %233, %239 : vector<1x8x256xf32>
    %241 = vector.extract_strided_slice %2 {offsets = [0, 24], sizes = [8, 1], strides = [1, 1]} : vector<8x36xf32> to vector<8x1xf32>
    %242 = vector.shape_cast %241 : vector<8x1xf32> to vector<1x8x1xf32>
    %243 = vector.extract_strided_slice %226 {offsets = [0, 2, 0], sizes = [1, 1, 256], strides = [1, 1, 1]} : vector<1x4x256xf32> to vector<1x1x256xf32>
    %244 = vector.broadcast %242 : vector<1x8x1xf32> to vector<1x8x256xf32>
    %245 = vector.broadcast %243 : vector<1x1x256xf32> to vector<1x8x256xf32>
    %246 = arith.mulf %244, %245 : vector<1x8x256xf32>
    %247 = arith.addf %240, %246 : vector<1x8x256xf32>
    %248 = vector.extract_strided_slice %2 {offsets = [0, 33], sizes = [8, 1], strides = [1, 1]} : vector<8x36xf32> to vector<8x1xf32>
    %249 = vector.shape_cast %248 : vector<8x1xf32> to vector<1x8x1xf32>
    %250 = vector.extract_strided_slice %226 {offsets = [0, 3, 0], sizes = [1, 1, 256], strides = [1, 1, 1]} : vector<1x4x256xf32> to vector<1x1x256xf32>
    %251 = vector.broadcast %249 : vector<1x8x1xf32> to vector<1x8x256xf32>
    %252 = vector.broadcast %250 : vector<1x1x256xf32> to vector<1x8x256xf32>
    %253 = arith.mulf %251, %252 : vector<1x8x256xf32>
    %254 = arith.addf %247, %253 : vector<1x8x256xf32>
    %c224_i32_22 = arith.constant 224 : i32
    %255 = tpu.dynamic_rotate %0 by %c224_i32_22 dim 2 : vector<1x4x256xf32>, i32 -> vector<1x4x256xf32>
    %c224_i32_23 = arith.constant 224 : i32
    %256 = vector.broadcast %c224_i32_23 : i32 to vector<1x1x256xi32>
    %257 = arith.cmpi slt, %4, %256 : vector<1x1x256xi32>
    %cst_24 = arith.constant 0.000000e+00 : f32
    %258 = vector.shape_cast %257 : vector<1x1x256xi1> to vector<1x1x256xi1>
    %259 = vector.broadcast %258 : vector<1x1x256xi1> to vector<1x4x256xi1>
    %260 = vector.broadcast %cst_24 : f32 to vector<1x4x256xf32>
    %261 = arith.select %259, %255, %260 : vector<1x4x256xi1>, vector<1x4x256xf32>
    %262 = vector.extract_strided_slice %2 {offsets = [0, 7], sizes = [8, 1], strides = [1, 1]} : vector<8x36xf32> to vector<8x1xf32>
    %263 = vector.shape_cast %262 : vector<8x1xf32> to vector<1x8x1xf32>
    %264 = vector.extract_strided_slice %261 {offsets = [0, 0, 0], sizes = [1, 1, 256], strides = [1, 1, 1]} : vector<1x4x256xf32> to vector<1x1x256xf32>
    %265 = vector.broadcast %263 : vector<1x8x1xf32> to vector<1x8x256xf32>
    %266 = vector.broadcast %264 : vector<1x1x256xf32> to vector<1x8x256xf32>
    %267 = arith.mulf %265, %266 : vector<1x8x256xf32>
    %268 = arith.addf %254, %267 : vector<1x8x256xf32>
    %269 = vector.extract_strided_slice %2 {offsets = [0, 16], sizes = [8, 1], strides = [1, 1]} : vector<8x36xf32> to vector<8x1xf32>
    %270 = vector.shape_cast %269 : vector<8x1xf32> to vector<1x8x1xf32>
    %271 = vector.extract_strided_slice %261 {offsets = [0, 1, 0], sizes = [1, 1, 256], strides = [1, 1, 1]} : vector<1x4x256xf32> to vector<1x1x256xf32>
    %272 = vector.broadcast %270 : vector<1x8x1xf32> to vector<1x8x256xf32>
    %273 = vector.broadcast %271 : vector<1x1x256xf32> to vector<1x8x256xf32>
    %274 = arith.mulf %272, %273 : vector<1x8x256xf32>
    %275 = arith.addf %268, %274 : vector<1x8x256xf32>
    %276 = vector.extract_strided_slice %2 {offsets = [0, 25], sizes = [8, 1], strides = [1, 1]} : vector<8x36xf32> to vector<8x1xf32>
    %277 = vector.shape_cast %276 : vector<8x1xf32> to vector<1x8x1xf32>
    %278 = vector.extract_strided_slice %261 {offsets = [0, 2, 0], sizes = [1, 1, 256], strides = [1, 1, 1]} : vector<1x4x256xf32> to vector<1x1x256xf32>
    %279 = vector.broadcast %277 : vector<1x8x1xf32> to vector<1x8x256xf32>
    %280 = vector.broadcast %278 : vector<1x1x256xf32> to vector<1x8x256xf32>
    %281 = arith.mulf %279, %280 : vector<1x8x256xf32>
    %282 = arith.addf %275, %281 : vector<1x8x256xf32>
    %283 = vector.extract_strided_slice %2 {offsets = [0, 34], sizes = [8, 1], strides = [1, 1]} : vector<8x36xf32> to vector<8x1xf32>
    %284 = vector.shape_cast %283 : vector<8x1xf32> to vector<1x8x1xf32>
    %285 = vector.extract_strided_slice %261 {offsets = [0, 3, 0], sizes = [1, 1, 256], strides = [1, 1, 1]} : vector<1x4x256xf32> to vector<1x1x256xf32>
    %286 = vector.broadcast %284 : vector<1x8x1xf32> to vector<1x8x256xf32>
    %287 = vector.broadcast %285 : vector<1x1x256xf32> to vector<1x8x256xf32>
    %288 = arith.mulf %286, %287 : vector<1x8x256xf32>
    %289 = arith.addf %282, %288 : vector<1x8x256xf32>
    %c222_i32 = arith.constant 222 : i32
    %290 = tpu.dynamic_rotate %0 by %c222_i32 dim 2 : vector<1x4x256xf32>, i32 -> vector<1x4x256xf32>
    %c224_i32_25 = arith.constant 224 : i32
    %291 = vector.broadcast %c224_i32_25 : i32 to vector<1x1x256xi32>
    %292 = arith.cmpi slt, %4, %291 : vector<1x1x256xi32>
    %c14_i32_26 = arith.constant 14 : i32
    %293 = vector.broadcast %c14_i32_26 : i32 to vector<1x1x256xi32>
    %294 = arith.cmpi slt, %6, %293 : vector<1x1x256xi32>
    %295 = arith.andi %292, %294 : vector<1x1x256xi1>
    %cst_27 = arith.constant 0.000000e+00 : f32
    %296 = vector.shape_cast %295 : vector<1x1x256xi1> to vector<1x1x256xi1>
    %297 = vector.broadcast %296 : vector<1x1x256xi1> to vector<1x4x256xi1>
    %298 = vector.broadcast %cst_27 : f32 to vector<1x4x256xf32>
    %299 = arith.select %297, %290, %298 : vector<1x4x256xi1>, vector<1x4x256xf32>
    %300 = vector.extract_strided_slice %2 {offsets = [0, 8], sizes = [8, 1], strides = [1, 1]} : vector<8x36xf32> to vector<8x1xf32>
    %301 = vector.shape_cast %300 : vector<8x1xf32> to vector<1x8x1xf32>
    %302 = vector.extract_strided_slice %299 {offsets = [0, 0, 0], sizes = [1, 1, 256], strides = [1, 1, 1]} : vector<1x4x256xf32> to vector<1x1x256xf32>
    %303 = vector.broadcast %301 : vector<1x8x1xf32> to vector<1x8x256xf32>
    %304 = vector.broadcast %302 : vector<1x1x256xf32> to vector<1x8x256xf32>
    %305 = arith.mulf %303, %304 : vector<1x8x256xf32>
    %306 = arith.addf %289, %305 : vector<1x8x256xf32>
    %307 = vector.extract_strided_slice %2 {offsets = [0, 17], sizes = [8, 1], strides = [1, 1]} : vector<8x36xf32> to vector<8x1xf32>
    %308 = vector.shape_cast %307 : vector<8x1xf32> to vector<1x8x1xf32>
    %309 = vector.extract_strided_slice %299 {offsets = [0, 1, 0], sizes = [1, 1, 256], strides = [1, 1, 1]} : vector<1x4x256xf32> to vector<1x1x256xf32>
    %310 = vector.broadcast %308 : vector<1x8x1xf32> to vector<1x8x256xf32>
    %311 = vector.broadcast %309 : vector<1x1x256xf32> to vector<1x8x256xf32>
    %312 = arith.mulf %310, %311 : vector<1x8x256xf32>
    %313 = arith.addf %306, %312 : vector<1x8x256xf32>
    %314 = vector.extract_strided_slice %2 {offsets = [0, 26], sizes = [8, 1], strides = [1, 1]} : vector<8x36xf32> to vector<8x1xf32>
    %315 = vector.shape_cast %314 : vector<8x1xf32> to vector<1x8x1xf32>
    %316 = vector.extract_strided_slice %299 {offsets = [0, 2, 0], sizes = [1, 1, 256], strides = [1, 1, 1]} : vector<1x4x256xf32> to vector<1x1x256xf32>
    %317 = vector.broadcast %315 : vector<1x8x1xf32> to vector<1x8x256xf32>
    %318 = vector.broadcast %316 : vector<1x1x256xf32> to vector<1x8x256xf32>
    %319 = arith.mulf %317, %318 : vector<1x8x256xf32>
    %320 = arith.addf %313, %319 : vector<1x8x256xf32>
    %321 = vector.extract_strided_slice %2 {offsets = [0, 35], sizes = [8, 1], strides = [1, 1]} : vector<8x36xf32> to vector<8x1xf32>
    %322 = vector.shape_cast %321 : vector<8x1xf32> to vector<1x8x1xf32>
    %323 = vector.extract_strided_slice %299 {offsets = [0, 3, 0], sizes = [1, 1, 256], strides = [1, 1, 1]} : vector<1x4x256xf32> to vector<1x1x256xf32>
    %324 = vector.broadcast %322 : vector<1x8x1xf32> to vector<1x8x256xf32>
    %325 = vector.broadcast %323 : vector<1x1x256xf32> to vector<1x8x256xf32>
    %326 = arith.mulf %324, %325 : vector<1x8x256xf32>
    %327 = arith.addf %320, %326 : vector<1x8x256xf32>
    %328 = vector.shape_cast %3 : vector<8x1xf32> to vector<1x8x1xf32>
    %329 = vector.broadcast %328 : vector<1x8x1xf32> to vector<1x8x256xf32>
    %330 = arith.addf %327, %329 : vector<1x8x256xf32>
    %cst_28 = arith.constant 0.000000e+00 : f32
    %331 = vector.broadcast %cst_28 : f32 to vector<1x8x256xf32>
    %332 = arith.maximumf %330, %331 : vector<1x8x256xf32>
    %c0_29 = arith.constant 0 : index
    %c4 = arith.constant 4 : index
    %c0_30 = arith.constant 0 : index
    %333 = vector.load %arg4[%c0_29, %c4, %c0_30] : memref<1x12x256xf32, #tpu.memory_space<vmem>>, vector<1x8x256xf32>
    tpu.vector_store %arg4[%c0_29, %c4, %c0_30], %332 {strides = array<i32>} : memref<1x12x256xf32, #tpu.memory_space<vmem>>, vector<1x8x256xf32>,
    return
  }
  func.func @transform_0(%arg0: i32) -> (i32, i32, i32) {
    %c0_i32 = arith.constant 0 : i32
    %c0_i32_0 = arith.constant 0 : i32
    %c0_i32_1 = arith.constant 0 : i32
    return %arg0, %c0_i32, %c0_i32_0 : i32, i32, i32
  }
  func.func @transform_1(%arg0: i32) -> (i32, i32) {
    %c0_i32 = arith.constant 0 : i32
    %c0_i32_0 = arith.constant 0 : i32
    %c0_i32_1 = arith.constant 0 : i32
    return %c0_i32, %c0_i32_0 : i32, i32
  }
  func.func @transform_2(%arg0: i32) -> (i32, i32) {
    %c0_i32 = arith.constant 0 : i32
    %c0_i32_0 = arith.constant 0 : i32
    %c0_i32_1 = arith.constant 0 : i32
    return %c0_i32, %c0_i32_0 : i32, i32
  }
  func.func @transform_3(%arg0: i32) -> (i32, i32, i32) {
    %c0_i32 = arith.constant 0 : i32
    %c0_i32_0 = arith.constant 0 : i32
    %c0_i32_1 = arith.constant 0 : i32
    return %arg0, %c0_i32, %c0_i32_0 : i32, i32, i32
  }
}

</mosaic_0001>

<llo_original>
// kernel: tpu_custom_call.1
$region0: #{tpu_custom_call.1}
  #allocation0 [shape = 'u32[]', space=smem, size = 0x4, offset = 0x4, fixed_abs, tag = 'smem constant byte address 0x4 - core index']
  #allocation1 [shape = 'u32[144,128]{1,0:T(1,128)}', space=vmem, size = 0x12000, scoped, tag = 'internal scratch']
  %s0 = inlined_call_operand.hbm [shape: f32[2,4,256], index: 0, kind: input, shape index: {}]
  %s1 = inlined_call_operand.vmem [shape: f32[8,36], index: 1, kind: input, shape index: {}]
  %s2 = inlined_call_operand.vmem [shape: f32[8,1], index: 2, kind: input, shape index: {}]
  %s3 = inlined_call_operand.vmem [shape: f32[2,12,256], index: 3, kind: output, shape index: {}]
  %s4 = sld [smem:[#allocation0]]
  $region49: #{tpu_custom_call.1} parent=0
    _
  %s6 = ssub.s32 1, %s4
  %s7 = scalar_select 0, %s6, %s4
  $region1: #{tpu_custom_call.1} parent=0
    #allocation2 [shape = 'u8[8192]{0}', space=vmem, size = 0x2000, scoped, tag = 'input window, operand 0']
    #allocation3 [shape = 's32[2]{0}', space=sflag, size = 0x8, scoped, tag = 'scoped memory for tpu_custom_call.1']
    %8 = vsyncpa [#allocation3], 0
    %s9 = scalar_lea.sflag [#allocation3], 1
    %10 = vsyncpa %s9, 0
    loop: start=0, step=1, limit=4
    $region2: #{tpu_custom_call.1} parent=1 // loop_pre_header
      _
    $region3: #{tpu_custom_call.1} parent=1 // loop_header
      %s12 = sphi 0, %s16
      %p13 = scmp.ge.s32.totalorder %s12, 4
      %s22 = sphi 0, %s24
      %s25 = sphi 0, %s22
      %s26 = sphi 0, %s25
      %s42 = sphi 0, %s26
      %s46 = sphi 0, %s46
      %s48 = sphi 0, %s46
      %s49 = sphi 0, %s48
      %s63 = sphi 0, %s49
      %s67 = sphi 0, %s67
      %s69 = sphi 0, %s67
      %s70 = sphi 0, %s69
      %s84 = sphi 0, %s70
      %s90 = sphi 0, %s92
      %s93 = sphi 0, %s90
      %s94 = sphi 0, %s93
      %s110 = sphi 0, %s94
    $region4: #{tpu_custom_call.1} parent=1 // loop_header_branch
      %15 = sbr.rel (%p13) target = $region8
    $region5: #{tpu_custom_call.1} parent=1 // loop_body
      %s17 = ssub.s32 %s12, 1
      %s18 = ssub.s32 %s12, 2
      %s19 = sadd.s32 %s12, 1
      %s20 = ssub.s32 %s12, %s19
      %p21 = scmp.eq.s32.totalorder %s20, 0
      %s23 = sadd.s32 %s22, 1
      %s24 = scalar_select %p21, %s22, %s23
      %p27 = pneg %p21
      %p28 = scmp.eq.s32.totalorder %s12, 1
      %p29 = por %p27, %p28
      %p30 = scmp.ne.s32.totalorder %s22, %s25
      %p31 = scmp.eq.s32.totalorder %s12, 0
      %p32 = por %p30, %p31
      %p33 = scmp.ne.s32.totalorder %s22, %s25
      %p34 = scmp.eq.s32.totalorder %s17, 1
      %p35 = por %p33, %p34
      %p36 = scmp.ne.s32.totalorder %s25, %s26
      %p37 = scmp.eq.s32.totalorder %s17, 0
      %p38 = por %p36, %p37
      %p39 = scmp.ne.s32.totalorder %s25, %s26
      %p40 = scmp.eq.s32.totalorder %s18, 1
      %p41 = por %p39, %p40
      %p43 = scmp.ne.s32.totalorder %s26, %s42
      %p44 = scmp.eq.s32.totalorder %s18, 0
      %p45 = por %p43, %p44
      %s47 = sadd.s32 %s46, 1
      %p50 = scmp.eq.s32.totalorder %s12, 1
      %p51 = scmp.ne.s32.totalorder %s46, %s48
      %p52 = scmp.eq.s32.totalorder %s12, 0
      %p53 = por %p51, %p52
      %p54 = scmp.ne.s32.totalorder %s46, %s48
      %p55 = scmp.eq.s32.totalorder %s17, 1
      %p56 = por %p54, %p55
      %p57 = scmp.ne.s32.totalorder %s48, %s49
      %p58 = scmp.eq.s32.totalorder %s17, 0
      %p59 = por %p57, %p58
      %p60 = scmp.ne.s32.totalorder %s48, %s49
      %p61 = scmp.eq.s32.totalorder %s18, 1
      %p62 = por %p60, %p61
      %p64 = scmp.ne.s32.totalorder %s49, %s63
      %p65 = scmp.eq.s32.totalorder %s18, 0
      %p66 = por %p64, %p65
      %s68 = sadd.s32 %s67, 1
      %p71 = scmp.eq.s32.totalorder %s12, 1
      %p72 = scmp.ne.s32.totalorder %s67, %s69
      %p73 = scmp.eq.s32.totalorder %s12, 0
      %p74 = por %p72, %p73
      %p75 = scmp.ne.s32.totalorder %s67, %s69
      %p76 = scmp.eq.s32.totalorder %s17, 1
      %p77 = por %p75, %p76
      %p78 = scmp.ne.s32.totalorder %s69, %s70
      %p79 = scmp.eq.s32.totalorder %s17, 0
      %p80 = por %p78, %p79
      %p81 = scmp.ne.s32.totalorder %s69, %s70
      %p82 = scmp.eq.s32.totalorder %s18, 1
      %p83 = por %p81, %p82
      %p85 = scmp.ne.s32.totalorder %s70, %s84
      %p86 = scmp.eq.s32.totalorder %s18, 0
      %p87 = por %p85, %p86
      %s88 = ssub.s32 %s12, %s19
      %p89 = scmp.eq.s32.totalorder %s88, 0
      %s91 = sadd.s32 %s90, 1
      %s92 = scalar_select %p89, %s90, %s91
      %p95 = pneg %p89
      %p96 = scmp.eq.s32.totalorder %s12, 1
      %p97 = por %p95, %p96
      %p98 = scmp.ne.s32.totalorder %s90, %s93
      %p99 = scmp.eq.s32.totalorder %s12, 0
      %p100 = por %p98, %p99
      %p101 = scmp.ne.s32.totalorder %s90, %s93
      %p102 = scmp.eq.s32.totalorder %s17, 1
      %p103 = por %p101, %p102
      %p104 = scmp.ne.s32.totalorder %s93, %s94
      %p105 = scmp.eq.s32.totalorder %s17, 0
      %p106 = por %p104, %p105
      %p107 = scmp.ne.s32.totalorder %s93, %s94
      %p108 = scmp.eq.s32.totalorder %s18, 1
      %p109 = por %p107, %p108
      %p111 = scmp.ne.s32.totalorder %s94, %s110
      %p112 = scmp.eq.s32.totalorder %s18, 0
      %p113 = por %p111, %p112
      %p114 = scmp.le.s32.totalorder 1, %s12
      %p115 = scmp.lt.s32.totalorder %s12, 3
      %p116 = pnand %p114, %p115
      %p117 = pneg %p116
      // Predicated region
      $region9: #{tpu_custom_call.1} parent=5 // pred_check
        _
      $region10: #{tpu_custom_call.1} parent=5 // pred_check_branch
        %119 = sbr.rel (%p116) target = $region12
      $region11: #{tpu_custom_call.1} parent=5 // pred_region
        %s120 = ssub.s32 %s12, 1
        // Predicated region
        $region13: #{tpu_custom_call.1} parent=11 // pred_check
          %p121 = pneg %p59
        $region14: #{tpu_custom_call.1} parent=11 // pred_check_branch
          %123 = sbr.rel (%p121) target = $region16
        $region15: #{tpu_custom_call.1} parent=11 // pred_region
          _
        $region16: #{tpu_custom_call.1} parent=11 // pred_fallthru
          _
        // Predicated region
        $region17: #{tpu_custom_call.1} parent=11 // pred_check
          %p124 = pneg %p80
        $region18: #{tpu_custom_call.1} parent=11 // pred_check_branch
          %126 = sbr.rel (%p124) target = $region20
        $region19: #{tpu_custom_call.1} parent=11 // pred_region
          _
        $region20: #{tpu_custom_call.1} parent=11 // pred_fallthru
          _
      $region12: #{tpu_custom_call.1} parent=5 // pred_fallthru
        _
      %p127 = scmp.lt.s32.totalorder %s12, 2
      // Predicated region
      $region21: #{tpu_custom_call.1} parent=5 // pred_check
        %p128 = pneg %p127
      $region22: #{tpu_custom_call.1} parent=5 // pred_check_branch
        %130 = sbr.rel (%p128) target = $region24
      $region23: #{tpu_custom_call.1} parent=5 // pred_region
        // Predicated region
        $region25: #{tpu_custom_call.1} parent=23 // pred_check
          %p131 = pneg %p32
        $region26: #{tpu_custom_call.1} parent=23 // pred_check_branch
          %133 = sbr.rel (%p131) target = $region28
        $region27: #{tpu_custom_call.1} parent=23 // pred_region
          %s134 = sand.u32 %s22, 1
          %s135 = scalar_lea.sflag [#allocation3], %s134
          %s136 = sand.u32 %s22, 1
          %s137 = smul.addr %s136, 8
          %s138 = scalar_lea.vmem [#allocation2], %s137
          %s140 = ssub.s32 128, 128
          %141 = vsyncadd %s135, %s140
          %s142 = smul.addr %s12, 2
          %s143 = smul.addr %s142, 64
          %s144 = scalar_lea.hbm %s0, %s143
          %s146 = sshll.u32 %s138, 4
          %s147 = int_to_ptr.vmem [resolvable:$true] %s146
          %149 = dma.hbm_to_vmem [thread:$0]  %s144, 128, %s147, %s135
        $region28: #{tpu_custom_call.1} parent=23 // pred_fallthru
          _
      $region24: #{tpu_custom_call.1} parent=5 // pred_fallthru
        _
      %p150 = scmp.le.s32.totalorder 1, %s12
      %p151 = scmp.lt.s32.totalorder %s12, 3
      %p152 = pnand %p150, %p151
      %p153 = pneg %p152
      // Predicated region
      $region29: #{tpu_custom_call.1} parent=5 // pred_check
        _
      $region30: #{tpu_custom_call.1} parent=5 // pred_check_branch
        %155 = sbr.rel (%p152) target = $region32
      $region31: #{tpu_custom_call.1} parent=5 // pred_region
        %s156 = ssub.s32 %s12, 1
        %s157 = sand.u32 %s25, 1
        %s158 = scalar_lea.sflag [#allocation3], %s157
        %s159 = sand.u32 %s25, 1
        %s160 = smul.addr %s159, 8
        %s161 = scalar_lea.vmem [#allocation2], %s160
        // Predicated region
        $region33: #{tpu_custom_call.1} parent=31 // pred_check
          %p162 = pneg %p38
        $region34: #{tpu_custom_call.1} parent=31 // pred_check_branch
          %164 = sbr.rel (%p162) target = $region36
        $region35: #{tpu_custom_call.1} parent=31 // pred_region
          %165 = dma.done %s158, 128
        $region36: #{tpu_custom_call.1} parent=31 // pred_fallthru
          _
        %s166 = sand.u32 %s25, 1
        %s167 = scalar_lea.sflag [#allocation3], %s166
        %s168 = sand.u32 %s25, 1
        %s169 = smul.addr %s168, 8
        %s170 = scalar_lea.vmem [#allocation2], %s169
        %p171 = pneg %p38
        %p172 = pneg %p35
        %p173 = pneg %p59
        %p174 = pneg %p56
        %p175 = pneg %p80
        %p176 = pneg %p77
        %p177 = pneg %p106
        %p178 = pneg %p103
        %p179 = scmp.lt.s32.totalorder %s17, 1
        %s180 = scalar_select %p179, %s17, 1
        %s181 = smul.addr %s180, 4
        %s182 = smul.addr %s181, 8
        %s183 = scalar_lea.vmem %s3, %s182
        %p184 = scmp.lt.s32.totalorder %s17, 1
        %s185 = scalar_select %p184, %s17, 1
        %s186 = smul.addr %s185, 4
        %s187 = smul.addr %s186, 8
        %s188 = scalar_lea.vmem %s3, %s187
        %v189 = vld [vmem:[%s161] sm:$0xff]
        %v191 = vcombine.high %v189, %v189
        %193 = vst [vmem:[%s188] sm:$0xf] %v189
        %194 = vst [vmem:[%s188 + $0x8] sm:$0xf] %v191
        %v195 = vld [vmem:[%s1] sm:$0xff]
        %v196 = vld [vmem:[%s2] sm:$0xff]
        %v197 = vlaneseq
        %v198 = vand.u32 %v197, 127
        %v199 = vadd.s32 %v198, 128
        %v200 = vand.u32 %v198, 15
        %v201 = vand.u32 %v199, 15
        %202 = vrot.lane.b32.xlu0 %v189, 34
        %v203 = vpop.permute.xlu0 %202
        %204 = vrot.lane.b32.xlu0 %v191, 34
        %v205 = vpop.permute.xlu0 %204
        %vm206 = vcmp.lt.s32.totalorder %v198, 34
        %v207 = vsel %vm206, %v203, %v205
        %v208 = vsel %vm206, %v205, %v203
        %vm209 = vcmp.ge.s32.totalorder %v198, 32
        %vm210 = vcmp.ge.s32.totalorder %v199, 32
        %vm211 = vcmp.ge.s32.totalorder %v200, 2
        %vm212 = vcmp.ge.s32.totalorder %v201, 2
        %vm213 = vmand %vm209, %vm211
        %vm214 = vmand %vm210, %vm212
        %v215 = vsel %vm213, 1, 0
        %v216 = vsel %vm214, 1, 0
        %vm217 = vcmp.eq.s32.totalorder %v215, 1
        %vm218 = vcmp.eq.s32.totalorder %v216, 1
        %v219 = vsel %vm217, %v208, 0.0
        %v220 = vsel %vm218, %v207, 0.0
        %222 = vset.pattern.permute.xlu0 0
        %223 = vperm.xlu0 %222, %v195
        %v224 = vpop.permute.xlu0 %223
        %v226 = vlaneseq
        %v227 = vshrl.u32 %v226, 7
        %v228 = vsub.s32 0, %v227
        %v229 = vrot.slane %v219, %v228
        %v230 = vlaneseq
        %v231 = vshrl.u32 %v230, 7
        %v232 = vsub.s32 0, %v231
        %v233 = vrot.slane %v220, %v232
        %v234 = vmul.f32 %v224, %v229
        %v235 = vmul.f32 %v224, %v233
        %v236 = vadd.f32 %v234, 0.0
        %v237 = vadd.f32 %v235, 0.0
        %238 = vset.pattern.permute.xlu0 9
        %239 = vperm.xlu0 %238, %v195
        %v240 = vpop.permute.xlu0 %239
        %v242 = vlaneseq
        %v243 = vshrl.u32 %v242, 7
        %v244 = vsub.s32 1, %v243
        %v245 = vrot.slane %v219, %v244
        %v246 = vlaneseq
        %v247 = vshrl.u32 %v246, 7
        %v248 = vsub.s32 1, %v247
        %v249 = vrot.slane %v220, %v248
        %v250 = vmul.f32 %v240, %v245
        %v251 = vmul.f32 %v240, %v249
        %v252 = vadd.f32 %v236, %v250
        %v253 = vadd.f32 %v237, %v251
        %254 = vset.pattern.permute.xlu0 18
        %255 = vperm.xlu0 %254, %v195
        %v256 = vpop.permute.xlu0 %255
        %v258 = vlaneseq
        %v259 = vshrl.u32 %v258, 7
        %v260 = vsub.s32 2, %v259
        %v261 = vrot.slane %v219, %v260
        %v262 = vlaneseq
        %v263 = vshrl.u32 %v262, 7
        %v264 = vsub.s32 2, %v263
        %v265 = vrot.slane %v220, %v264
        %v266 = vmul.f32 %v256, %v261
        %v267 = vmul.f32 %v256, %v265
        %v268 = vadd.f32 %v252, %v266
        %v269 = vadd.f32 %v253, %v267
        %270 = vset.pattern.permute.xlu0 27
        %271 = vperm.xlu0 %270, %v195
        %v272 = vpop.permute.xlu0 %271
        %v274 = vlaneseq
        %v275 = vshrl.u32 %v274, 7
        %v276 = vsub.s32 3, %v275
        %v277 = vrot.slane %v219, %v276
        %v278 = vlaneseq
        %v279 = vshrl.u32 %v278, 7
        %v280 = vsub.s32 3, %v279
        %v281 = vrot.slane %v220, %v280
        %v282 = vmul.f32 %v272, %v277
        %v283 = vmul.f32 %v272, %v281
        %v284 = vadd.f32 %v268, %v282
        %v285 = vadd.f32 %v269, %v283
        %286 = vrot.lane.b32.xlu0 %v189, 32
        %v287 = vpop.permute.xlu0 %286
        %288 = vrot.lane.b32.xlu0 %v191, 32
        %v289 = vpop.permute.xlu0 %288
        %vm290 = vcmp.lt.s32.totalorder %v198, 32
        %v291 = vsel %vm290, %v287, %v289
        %v292 = vsel %vm290, %v289, %v287
        %v293 = vsel %vm209, 1, 0
        %v294 = vsel %vm210, 1, 0
        %vm295 = vcmp.eq.s32.totalorder %v293, 1
        %vm296 = vcmp.eq.s32.totalorder %v294, 1
        %v297 = vsel %vm295, %v292, 0.0
        %v298 = vsel %vm296, %v291, 0.0
        %299 = vset.pattern.permute.xlu0 1
        %300 = vperm.xlu0 %299, %v195
        %v301 = vpop.permute.xlu0 %300
        %v303 = vlaneseq
        %v304 = vshrl.u32 %v303, 7
        %v305 = vsub.s32 0, %v304
        %v306 = vrot.slane %v297, %v305
        %v307 = vlaneseq
        %v308 = vshrl.u32 %v307, 7
        %v309 = vsub.s32 0, %v308
        %v310 = vrot.slane %v298, %v309
        %v311 = vmul.f32 %v301, %v306
        %v312 = vmul.f32 %v301, %v310
        %v313 = vadd.f32 %v284, %v311
        %v314 = vadd.f32 %v285, %v312
        %315 = vset.pattern.permute.xlu0 10
        %316 = vperm.xlu0 %315, %v195
        %v317 = vpop.permute.xlu0 %316
        %v319 = vlaneseq
        %v320 = vshrl.u32 %v319, 7
        %v321 = vsub.s32 1, %v320
        %v322 = vrot.slane %v297, %v321
        %v323 = vlaneseq
        %v324 = vshrl.u32 %v323, 7
        %v325 = vsub.s32 1, %v324
        %v326 = vrot.slane %v298, %v325
        %v327 = vmul.f32 %v317, %v322
        %v328 = vmul.f32 %v317, %v326
        %v329 = vadd.f32 %v313, %v327
        %v330 = vadd.f32 %v314, %v328
        %331 = vset.pattern.permute.xlu0 19
        %332 = vperm.xlu0 %331, %v195
        %v333 = vpop.permute.xlu0 %332
        %v335 = vlaneseq
        %v336 = vshrl.u32 %v335, 7
        %v337 = vsub.s32 2, %v336
        %v338 = vrot.slane %v297, %v337
        %v339 = vlaneseq
        %v340 = vshrl.u32 %v339, 7
        %v341 = vsub.s32 2, %v340
        %v342 = vrot.slane %v298, %v341
        %v343 = vmul.f32 %v333, %v338
        %v344 = vmul.f32 %v333, %v342
        %v345 = vadd.f32 %v329, %v343
        %v346 = vadd.f32 %v330, %v344
        %347 = vset.pattern.permute.xlu0 28
        %348 = vperm.xlu0 %347, %v195
        %v349 = vpop.permute.xlu0 %348
        %v351 = vlaneseq
        %v352 = vshrl.u32 %v351, 7
        %v353 = vsub.s32 3, %v352
        %v354 = vrot.slane %v297, %v353
        %v355 = vlaneseq
        %v356 = vshrl.u32 %v355, 7
        %v357 = vsub.s32 3, %v356
        %v358 = vrot.slane %v298, %v357
        %v359 = vmul.f32 %v349, %v354
        %v360 = vmul.f32 %v349, %v358
        %v361 = vadd.f32 %v345, %v359
        %v362 = vadd.f32 %v346, %v360
        %363 = vrot.lane.b32.xlu0 %v189, 30
        %v364 = vpop.permute.xlu0 %363
        %365 = vrot.lane.b32.xlu0 %v191, 30
        %v366 = vpop.permute.xlu0 %365
        %vm367 = vcmp.lt.s32.totalorder %v198, 30
        %v368 = vsel %vm367, %v364, %v366
        %v369 = vsel %vm367, %v366, %v364
        %vm370 = vcmp.lt.s32.totalorder %v200, 14
        %vm371 = vcmp.lt.s32.totalorder %v201, 14
        %vm372 = vmand %vm209, %vm370
        %vm373 = vmand %vm210, %vm371
        %v374 = vsel %vm372, 1, 0
        %v375 = vsel %vm373, 1, 0
        %vm376 = vcmp.eq.s32.totalorder %v374, 1
        %vm377 = vcmp.eq.s32.totalorder %v375, 1
        %v378 = vsel %vm376, %v369, 0.0
        %v379 = vsel %vm377, %v368, 0.0
        %380 = vset.pattern.permute.xlu0 2
        %381 = vperm.xlu0 %380, %v195
        %v382 = vpop.permute.xlu0 %381
        %v384 = vlaneseq
        %v385 = vshrl.u32 %v384, 7
        %v386 = vsub.s32 0, %v385
        %v387 = vrot.slane %v378, %v386
        %v388 = vlaneseq
        %v389 = vshrl.u32 %v388, 7
        %v390 = vsub.s32 0, %v389
        %v391 = vrot.slane %v379, %v390
        %v392 = vmul.f32 %v382, %v387
        %v393 = vmul.f32 %v382, %v391
        %v394 = vadd.f32 %v361, %v392
        %v395 = vadd.f32 %v362, %v393
        %396 = vset.pattern.permute.xlu0 11
        %397 = vperm.xlu0 %396, %v195
        %v398 = vpop.permute.xlu0 %397
        %v400 = vlaneseq
        %v401 = vshrl.u32 %v400, 7
        %v402 = vsub.s32 1, %v401
        %v403 = vrot.slane %v378, %v402
        %v404 = vlaneseq
        %v405 = vshrl.u32 %v404, 7
        %v406 = vsub.s32 1, %v405
        %v407 = vrot.slane %v379, %v406
        %v408 = vmul.f32 %v398, %v403
        %v409 = vmul.f32 %v398, %v407
        %v410 = vadd.f32 %v394, %v408
        %v411 = vadd.f32 %v395, %v409
        %412 = vset.pattern.permute.xlu0 20
        %413 = vperm.xlu0 %412, %v195
        %v414 = vpop.permute.xlu0 %413
        %v416 = vlaneseq
        %v417 = vshrl.u32 %v416, 7
        %v418 = vsub.s32 2, %v417
        %v419 = vrot.slane %v378, %v418
        %v420 = vlaneseq
        %v421 = vshrl.u32 %v420, 7
        %v422 = vsub.s32 2, %v421
        %v423 = vrot.slane %v379, %v422
        %v424 = vmul.f32 %v414, %v419
        %v425 = vmul.f32 %v414, %v423
        %v426 = vadd.f32 %v410, %v424
        %v427 = vadd.f32 %v411, %v425
        %428 = vset.pattern.permute.xlu0 29
        %429 = vperm.xlu0 %428, %v195
        %v430 = vpop.permute.xlu0 %429
        %v432 = vlaneseq
        %v433 = vshrl.u32 %v432, 7
        %v434 = vsub.s32 3, %v433
        %v435 = vrot.slane %v378, %v434
        %v436 = vlaneseq
        %v437 = vshrl.u32 %v436, 7
        %v438 = vsub.s32 3, %v437
        %v439 = vrot.slane %v379, %v438
        %v440 = vmul.f32 %v430, %v435
        %v441 = vmul.f32 %v430, %v439
        %v442 = vadd.f32 %v426, %v440
        %v443 = vadd.f32 %v427, %v441
        %444 = vrot.lane.b32.xlu0 %v189, 2
        %v445 = vpop.permute.xlu0 %444
        %446 = vrot.lane.b32.xlu0 %v191, 2
        %v447 = vpop.permute.xlu0 %446
        %vm448 = vcmp.lt.s32.totalorder %v198, 2
        %v449 = vsel %vm448, %v445, %v447
        %v450 = vsel %vm448, %v447, %v445
        %v451 = vsel %vm211, 1, 0
        %v452 = vsel %vm212, 1, 0
        %vm453 = vcmp.eq.s32.totalorder %v451, 1
        %vm454 = vcmp.eq.s32.totalorder %v452, 1
        %v455 = vsel %vm453, %v450, 0.0
        %v456 = vsel %vm454, %v449, 0.0
        %457 = vset.pattern.permute.xlu0 3
        %458 = vperm.xlu0 %457, %v195
        %v459 = vpop.permute.xlu0 %458
        %v461 = vlaneseq
        %v462 = vshrl.u32 %v461, 7
        %v463 = vsub.s32 0, %v462
        %v464 = vrot.slane %v455, %v463
        %v465 = vlaneseq
        %v466 = vshrl.u32 %v465, 7
        %v467 = vsub.s32 0, %v466
        %v468 = vrot.slane %v456, %v467
        %v469 = vmul.f32 %v459, %v464
        %v470 = vmul.f32 %v459, %v468
        %v471 = vadd.f32 %v442, %v469
        %v472 = vadd.f32 %v443, %v470
        %473 = vset.pattern.permute.xlu0 12
        %474 = vperm.xlu0 %473, %v195
        %v475 = vpop.permute.xlu0 %474
        %v477 = vlaneseq
        %v478 = vshrl.u32 %v477, 7
        %v479 = vsub.s32 1, %v478
        %v480 = vrot.slane %v455, %v479
        %v481 = vlaneseq
        %v482 = vshrl.u32 %v481, 7
        %v483 = vsub.s32 1, %v482
        %v484 = vrot.slane %v456, %v483
        %v485 = vmul.f32 %v475, %v480
        %v486 = vmul.f32 %v475, %v484
        %v487 = vadd.f32 %v471, %v485
        %v488 = vadd.f32 %v472, %v486
        %489 = vset.pattern.permute.xlu0 21
        %490 = vperm.xlu0 %489, %v195
        %v491 = vpop.permute.xlu0 %490
        %v493 = vlaneseq
        %v494 = vshrl.u32 %v493, 7
        %v495 = vsub.s32 2, %v494
        %v496 = vrot.slane %v455, %v495
        %v497 = vlaneseq
        %v498 = vshrl.u32 %v497, 7
        %v499 = vsub.s32 2, %v498
        %v500 = vrot.slane %v456, %v499
        %v501 = vmul.f32 %v491, %v496
        %v502 = vmul.f32 %v491, %v500
        %v503 = vadd.f32 %v487, %v501
        %v504 = vadd.f32 %v488, %v502
        %505 = vset.pattern.permute.xlu0 30
        %506 = vperm.xlu0 %505, %v195
        %v507 = vpop.permute.xlu0 %506
        %v509 = vlaneseq
        %v510 = vshrl.u32 %v509, 7
        %v511 = vsub.s32 3, %v510
        %v512 = vrot.slane %v455, %v511
        %v513 = vlaneseq
        %v514 = vshrl.u32 %v513, 7
        %v515 = vsub.s32 3, %v514
        %v516 = vrot.slane %v456, %v515
        %v517 = vmul.f32 %v507, %v512
        %v518 = vmul.f32 %v507, %v516
        %v519 = vadd.f32 %v503, %v517
        %v520 = vadd.f32 %v504, %v518
        %521 = vset.pattern.permute.xlu0 4
        %522 = vperm.xlu0 %521, %v195
        %v523 = vpop.permute.xlu0 %522
        %v525 = vlaneseq
        %v526 = vshrl.u32 %v525, 7
        %v527 = vsub.s32 0, %v526
        %v528 = vrot.slane %v189, %v527
        %v529 = vlaneseq
        %v530 = vshrl.u32 %v529, 7
        %v531 = vsub.s32 4, %v530
        %v532 = vrot.slane %v189, %v531
        %v535 = vlaneseq
        %v536 = vshrl.u32 %v535, 7
        %v537 = vsub.s32 0, %v536
        %v538 = vrot.slane %v528, %v537
        %v539 = vlaneseq
        %v540 = vshrl.u32 %v539, 7
        %v541 = vsub.s32 0, %v540
        %v542 = vrot.slane %v532, %v541
        %v543 = vmul.f32 %v523, %v538
        %v544 = vmul.f32 %v523, %v542
        %v545 = vadd.f32 %v519, %v543
        %v546 = vadd.f32 %v520, %v544
        %547 = vset.pattern.permute.xlu0 13
        %548 = vperm.xlu0 %547, %v195
        %v549 = vpop.permute.xlu0 %548
        %v551 = vlaneseq
        %v552 = vshrl.u32 %v551, 7
        %v553 = vsub.s32 1, %v552
        %v554 = vrot.slane %v189, %v553
        %v555 = vlaneseq
        %v556 = vshrl.u32 %v555, 7
        %v557 = vsub.s32 5, %v556
        %v558 = vrot.slane %v189, %v557
        %v561 = vlaneseq
        %v562 = vshrl.u32 %v561, 7
        %v563 = vsub.s32 1, %v562
        %v564 = vrot.slane %v554, %v563
        %v565 = vlaneseq
        %v566 = vshrl.u32 %v565, 7
        %v567 = vsub.s32 1, %v566
        %v568 = vrot.slane %v558, %v567
        %v569 = vmul.f32 %v549, %v564
        %v570 = vmul.f32 %v549, %v568
        %v571 = vadd.f32 %v545, %v569
        %v572 = vadd.f32 %v546, %v570
        %573 = vset.pattern.permute.xlu0 22
        %574 = vperm.xlu0 %573, %v195
        %v575 = vpop.permute.xlu0 %574
        %v577 = vlaneseq
        %v578 = vshrl.u32 %v577, 7
        %v579 = vsub.s32 2, %v578
        %v580 = vrot.slane %v189, %v579
        %v581 = vlaneseq
        %v582 = vshrl.u32 %v581, 7
        %v583 = vsub.s32 6, %v582
        %v584 = vrot.slane %v189, %v583
        %v587 = vlaneseq
        %v588 = vshrl.u32 %v587, 7
        %v589 = vsub.s32 2, %v588
        %v590 = vrot.slane %v580, %v589
        %v591 = vlaneseq
        %v592 = vshrl.u32 %v591, 7
        %v593 = vsub.s32 2, %v592
        %v594 = vrot.slane %v584, %v593
        %v595 = vmul.f32 %v575, %v590
        %v596 = vmul.f32 %v575, %v594
        %v597 = vadd.f32 %v571, %v595
        %v598 = vadd.f32 %v572, %v596
        %599 = vset.pattern.permute.xlu0 31
        %600 = vperm.xlu0 %599, %v195
        %v601 = vpop.permute.xlu0 %600
        %v603 = vlaneseq
        %v604 = vshrl.u32 %v603, 7
        %v605 = vsub.s32 3, %v604
        %v606 = vrot.slane %v189, %v605
        %v607 = vlaneseq
        %v608 = vshrl.u32 %v607, 7
        %v609 = vsub.s32 7, %v608
        %v610 = vrot.slane %v189, %v609
        %v613 = vlaneseq
        %v614 = vshrl.u32 %v613, 7
        %v615 = vsub.s32 3, %v614
        %v616 = vrot.slane %v606, %v615
        %v617 = vlaneseq
        %v618 = vshrl.u32 %v617, 7
        %v619 = vsub.s32 3, %v618
        %v620 = vrot.slane %v610, %v619
        %v621 = vmul.f32 %v601, %v616
        %v622 = vmul.f32 %v601, %v620
        %v623 = vadd.f32 %v597, %v621
        %v624 = vadd.f32 %v598, %v622
        %625 = vrot.lane.b32.xlu0 %v189, 126
        %v626 = vpop.permute.xlu0 %625
        %627 = vrot.lane.b32.xlu0 %v191, 126
        %v628 = vpop.permute.xlu0 %627
        %vm629 = vcmp.lt.s32.totalorder %v198, 126
        %v630 = vsel %vm629, %v626, %v628
        %v631 = vsel %vm629, %v628, %v626
        %v632 = vsel %vm370, 1, 0
        %v633 = vsel %vm371, 1, 0
        %vm634 = vcmp.eq.s32.totalorder %v632, 1
        %vm635 = vcmp.eq.s32.totalorder %v633, 1
        %v636 = vsel %vm634, %v630, 0.0
        %v637 = vsel %vm635, %v631, 0.0
        %638 = vset.pattern.permute.xlu0 5
        %639 = vperm.xlu0 %638, %v195
        %v640 = vpop.permute.xlu0 %639
        %v642 = vlaneseq
        %v643 = vshrl.u32 %v642, 7
        %v644 = vsub.s32 0, %v643
        %v645 = vrot.slane %v636, %v644
        %v646 = vlaneseq
        %v647 = vshrl.u32 %v646, 7
        %v648 = vsub.s32 0, %v647
        %v649 = vrot.slane %v637, %v648
        %v650 = vmul.f32 %v640, %v645
        %v651 = vmul.f32 %v640, %v649
        %v652 = vadd.f32 %v623, %v650
        %v653 = vadd.f32 %v624, %v651
        %654 = vset.pattern.permute.xlu0 14
        %655 = vperm.xlu0 %654, %v195
        %v656 = vpop.permute.xlu0 %655
        %v658 = vlaneseq
        %v659 = vshrl.u32 %v658, 7
        %v660 = vsub.s32 1, %v659
        %v661 = vrot.slane %v636, %v660
        %v662 = vlaneseq
        %v663 = vshrl.u32 %v662, 7
        %v664 = vsub.s32 1, %v663
        %v665 = vrot.slane %v637, %v664
        %v666 = vmul.f32 %v656, %v661
        %v667 = vmul.f32 %v656, %v665
        %v668 = vadd.f32 %v652, %v666
        %v669 = vadd.f32 %v653, %v667
        %670 = vset.pattern.permute.xlu0 23
        %671 = vperm.xlu0 %670, %v195
        %v672 = vpop.permute.xlu0 %671
        %v674 = vlaneseq
        %v675 = vshrl.u32 %v674, 7
        %v676 = vsub.s32 2, %v675
        %v677 = vrot.slane %v636, %v676
        %v678 = vlaneseq
        %v679 = vshrl.u32 %v678, 7
        %v680 = vsub.s32 2, %v679
        %v681 = vrot.slane %v637, %v680
        %v682 = vmul.f32 %v672, %v677
        %v683 = vmul.f32 %v672, %v681
        %v684 = vadd.f32 %v668, %v682
        %v685 = vadd.f32 %v669, %v683
        %686 = vset.pattern.permute.xlu0 32
        %687 = vperm.xlu0 %686, %v195
        %v688 = vpop.permute.xlu0 %687
        %v690 = vlaneseq
        %v691 = vshrl.u32 %v690, 7
        %v692 = vsub.s32 3, %v691
        %v693 = vrot.slane %v636, %v692
        %v694 = vlaneseq
        %v695 = vshrl.u32 %v694, 7
        %v696 = vsub.s32 3, %v695
        %v697 = vrot.slane %v637, %v696
        %v698 = vmul.f32 %v688, %v693
        %v699 = vmul.f32 %v688, %v697
        %v700 = vadd.f32 %v684, %v698
        %v701 = vadd.f32 %v685, %v699
        %702 = vrot.lane.b32.xlu0 %v189, 98
        %v703 = vpop.permute.xlu0 %702
        %704 = vrot.lane.b32.xlu0 %v191, 98
        %v705 = vpop.permute.xlu0 %704
        %vm706 = vcmp.lt.s32.totalorder %v198, 98
        %v707 = vsel %vm706, %v703, %v705
        %v708 = vsel %vm706, %v705, %v703
        %vm709 = vcmp.lt.s32.totalorder %v198, 224
        %vm710 = vcmp.lt.s32.totalorder %v199, 224
        %vm711 = vmand %vm709, %vm211
        %vm712 = vmand %vm710, %vm212
        %v713 = vsel %vm711, 1, 0
        %v714 = vsel %vm712, 1, 0
        %vm715 = vcmp.eq.s32.totalorder %v713, 1
        %vm716 = vcmp.eq.s32.totalorder %v714, 1
        %v717 = vsel %vm715, %v707, 0.0
        %v718 = vsel %vm716, %v708, 0.0
        %719 = vset.pattern.permute.xlu0 6
        %720 = vperm.xlu0 %719, %v195
        %v721 = vpop.permute.xlu0 %720
        %v723 = vlaneseq
        %v724 = vshrl.u32 %v723, 7
        %v725 = vsub.s32 0, %v724
        %v726 = vrot.slane %v717, %v725
        %v727 = vlaneseq
        %v728 = vshrl.u32 %v727, 7
        %v729 = vsub.s32 0, %v728
        %v730 = vrot.slane %v718, %v729
        %v731 = vmul.f32 %v721, %v726
        %v732 = vmul.f32 %v721, %v730
        %v733 = vadd.f32 %v700, %v731
        %v734 = vadd.f32 %v701, %v732
        %735 = vset.pattern.permute.xlu0 15
        %736 = vperm.xlu0 %735, %v195
        %v737 = vpop.permute.xlu0 %736
        %v739 = vlaneseq
        %v740 = vshrl.u32 %v739, 7
        %v741 = vsub.s32 1, %v740
        %v742 = vrot.slane %v717, %v741
        %v743 = vlaneseq
        %v744 = vshrl.u32 %v743, 7
        %v745 = vsub.s32 1, %v744
        %v746 = vrot.slane %v718, %v745
        %v747 = vmul.f32 %v737, %v742
        %v748 = vmul.f32 %v737, %v746
        %v749 = vadd.f32 %v733, %v747
        %v750 = vadd.f32 %v734, %v748
        %751 = vset.pattern.permute.xlu0 24
        %752 = vperm.xlu0 %751, %v195
        %v753 = vpop.permute.xlu0 %752
        %v755 = vlaneseq
        %v756 = vshrl.u32 %v755, 7
        %v757 = vsub.s32 2, %v756
        %v758 = vrot.slane %v717, %v757
        %v759 = vlaneseq
        %v760 = vshrl.u32 %v759, 7
        %v761 = vsub.s32 2, %v760
        %v762 = vrot.slane %v718, %v761
        %v763 = vmul.f32 %v753, %v758
        %v764 = vmul.f32 %v753, %v762
        %v765 = vadd.f32 %v749, %v763
        %v766 = vadd.f32 %v750, %v764
        %767 = vset.pattern.permute.xlu0 33
        %768 = vperm.xlu0 %767, %v195
        %v769 = vpop.permute.xlu0 %768
        %v771 = vlaneseq
        %v772 = vshrl.u32 %v771, 7
        %v773 = vsub.s32 3, %v772
        %v774 = vrot.slane %v717, %v773
        %v775 = vlaneseq
        %v776 = vshrl.u32 %v775, 7
        %v777 = vsub.s32 3, %v776
        %v778 = vrot.slane %v718, %v777
        %v779 = vmul.f32 %v769, %v774
        %v780 = vmul.f32 %v769, %v778
        %v781 = vadd.f32 %v765, %v779
        %v782 = vadd.f32 %v766, %v780
        %783 = vrot.lane.b32.xlu0 %v189, 96
        %v784 = vpop.permute.xlu0 %783
        %785 = vrot.lane.b32.xlu0 %v191, 96
        %v786 = vpop.permute.xlu0 %785
        %vm787 = vcmp.lt.s32.totalorder %v198, 96
        %v788 = vsel %vm787, %v784, %v786
        %v789 = vsel %vm787, %v786, %v784
        %v790 = vsel %vm709, 1, 0
        %v791 = vsel %vm710, 1, 0
        %vm792 = vcmp.eq.s32.totalorder %v790, 1
        %vm793 = vcmp.eq.s32.totalorder %v791, 1
        %v794 = vsel %vm792, %v788, 0.0
        %v795 = vsel %vm793, %v789, 0.0
        %796 = vset.pattern.permute.xlu0 7
        %797 = vperm.xlu0 %796, %v195
        %v798 = vpop.permute.xlu0 %797
        %v800 = vlaneseq
        %v801 = vshrl.u32 %v800, 7
        %v802 = vsub.s32 0, %v801
        %v803 = vrot.slane %v794, %v802
        %v804 = vlaneseq
        %v805 = vshrl.u32 %v804, 7
        %v806 = vsub.s32 0, %v805
        %v807 = vrot.slane %v795, %v806
        %v808 = vmul.f32 %v798, %v803
        %v809 = vmul.f32 %v798, %v807
        %v810 = vadd.f32 %v781, %v808
        %v811 = vadd.f32 %v782, %v809
        %812 = vset.pattern.permute.xlu0 16
        %813 = vperm.xlu0 %812, %v195
        %v814 = vpop.permute.xlu0 %813
        %v816 = vlaneseq
        %v817 = vshrl.u32 %v816, 7
        %v818 = vsub.s32 1, %v817
        %v819 = vrot.slane %v794, %v818
        %v820 = vlaneseq
        %v821 = vshrl.u32 %v820, 7
        %v822 = vsub.s32 1, %v821
        %v823 = vrot.slane %v795, %v822
        %v824 = vmul.f32 %v814, %v819
        %v825 = vmul.f32 %v814, %v823
        %v826 = vadd.f32 %v810, %v824
        %v827 = vadd.f32 %v811, %v825
        %828 = vset.pattern.permute.xlu0 25
        %829 = vperm.xlu0 %828, %v195
        %v830 = vpop.permute.xlu0 %829
        %v832 = vlaneseq
        %v833 = vshrl.u32 %v832, 7
        %v834 = vsub.s32 2, %v833
        %v835 = vrot.slane %v794, %v834
        %v836 = vlaneseq
        %v837 = vshrl.u32 %v836, 7
        %v838 = vsub.s32 2, %v837
        %v839 = vrot.slane %v795, %v838
        %v840 = vmul.f32 %v830, %v835
        %v841 = vmul.f32 %v830, %v839
        %v842 = vadd.f32 %v826, %v840
        %v843 = vadd.f32 %v827, %v841
        %844 = vset.pattern.permute.xlu0 34
        %845 = vperm.xlu0 %844, %v195
        %v846 = vpop.permute.xlu0 %845
        %v848 = vlaneseq
        %v849 = vshrl.u32 %v848, 7
        %v850 = vsub.s32 3, %v849
        %v851 = vrot.slane %v794, %v850
        %v852 = vlaneseq
        %v853 = vshrl.u32 %v852, 7
        %v854 = vsub.s32 3, %v853
        %v855 = vrot.slane %v795, %v854
        %v856 = vmul.f32 %v846, %v851
        %v857 = vmul.f32 %v846, %v855
        %v858 = vadd.f32 %v842, %v856
        %v859 = vadd.f32 %v843, %v857
        %860 = vrot.lane.b32.xlu0 %v189, 94
        %v861 = vpop.permute.xlu0 %860
        %862 = vrot.lane.b32.xlu0 %v191, 94
        %v863 = vpop.permute.xlu0 %862
        %vm864 = vcmp.lt.s32.totalorder %v198, 94
        %v865 = vsel %vm864, %v861, %v863
        %v866 = vsel %vm864, %v863, %v861
        %vm867 = vmand %vm709, %vm370
        %vm868 = vmand %vm710, %vm371
        %v869 = vsel %vm867, 1, 0
        %v870 = vsel %vm868, 1, 0
        %vm871 = vcmp.eq.s32.totalorder %v869, 1
        %vm872 = vcmp.eq.s32.totalorder %v870, 1
        %v873 = vsel %vm871, %v865, 0.0
        %v874 = vsel %vm872, %v866, 0.0
        %875 = vset.pattern.permute.xlu0 8
        %876 = vperm.xlu0 %875, %v195
        %v877 = vpop.permute.xlu0 %876
        %v879 = vlaneseq
        %v880 = vshrl.u32 %v879, 7
        %v881 = vsub.s32 0, %v880
        %v882 = vrot.slane %v873, %v881
        %v883 = vlaneseq
        %v884 = vshrl.u32 %v883, 7
        %v885 = vsub.s32 0, %v884
        %v886 = vrot.slane %v874, %v885
        %v887 = vmul.f32 %v877, %v882
        %v888 = vmul.f32 %v877, %v886
        %v889 = vadd.f32 %v858, %v887
        %v890 = vadd.f32 %v859, %v888
        %891 = vset.pattern.permute.xlu0 17
        %892 = vperm.xlu0 %891, %v195
        %v893 = vpop.permute.xlu0 %892
        %v895 = vlaneseq
        %v896 = vshrl.u32 %v895, 7
        %v897 = vsub.s32 1, %v896
        %v898 = vrot.slane %v873, %v897
        %v899 = vlaneseq
        %v900 = vshrl.u32 %v899, 7
        %v901 = vsub.s32 1, %v900
        %v902 = vrot.slane %v874, %v901
        %v903 = vmul.f32 %v893, %v898
        %v904 = vmul.f32 %v893, %v902
        %v905 = vadd.f32 %v889, %v903
        %v906 = vadd.f32 %v890, %v904
        %907 = vset.pattern.permute.xlu0 26
        %908 = vperm.xlu0 %907, %v195
        %v909 = vpop.permute.xlu0 %908
        %v911 = vlaneseq
        %v912 = vshrl.u32 %v911, 7
        %v913 = vsub.s32 2, %v912
        %v914 = vrot.slane %v873, %v913
        %v915 = vlaneseq
        %v916 = vshrl.u32 %v915, 7
        %v917 = vsub.s32 2, %v916
        %v918 = vrot.slane %v874, %v917
        %v919 = vmul.f32 %v909, %v914
        %v920 = vmul.f32 %v909, %v918
        %v921 = vadd.f32 %v905, %v919
        %v922 = vadd.f32 %v906, %v920
        %923 = vset.pattern.permute.xlu0 35
        %924 = vperm.xlu0 %923, %v195
        %v925 = vpop.permute.xlu0 %924
        %v927 = vlaneseq
        %v928 = vshrl.u32 %v927, 7
        %v929 = vsub.s32 3, %v928
        %v930 = vrot.slane %v873, %v929
        %v931 = vlaneseq
        %v932 = vshrl.u32 %v931, 7
        %v933 = vsub.s32 3, %v932
        %v934 = vrot.slane %v874, %v933
        %v935 = vmul.f32 %v925, %v930
        %v936 = vmul.f32 %v925, %v934
        %v937 = vadd.f32 %v921, %v935
        %v938 = vadd.f32 %v922, %v936
        %940 = vset.pattern.permute.xlu0 0
        %941 = vperm.xlu0 %940, %v196
        %v942 = vpop.permute.xlu0 %941
        %v944 = vadd.f32 %v937, %v942
        %v945 = vadd.f32 %v938, %v942
        %v946 = vmax.f32 %v944, 0.0
        %v947 = vmax.f32 %v945, 0.0
        %v950 = vrot.slane %v946, 4
        %v951 = vrot.slane %v947, 4
        %954 = vst [vmem:[%s188] sm:$0xf0] %v950
        %955 = vst [vmem:[%s188 + $0x8] sm:$0xf0] %v951
        %956 = vst [vmem:[%s188 + $0x10] sm:$0xf] %v950
        %957 = vst [vmem:[%s188 + $0x18] sm:$0xf] %v951
        %p958 = scmp.lt.s32.totalorder %s17, 1
        %s959 = scalar_select %p958, %s17, 1
        %s960 = smul.addr %s959, 4
        %s961 = smul.addr %s960, 8
        %s962 = scalar_lea.vmem %s3, %s961
        // Predicated region
        $region37: #{tpu_custom_call.1} parent=31 // pred_check
          %p963 = pneg %p103
        $region38: #{tpu_custom_call.1} parent=31 // pred_check_branch
          %965 = sbr.rel (%p963) target = $region40
        $region39: #{tpu_custom_call.1} parent=31 // pred_region
          _
        $region40: #{tpu_custom_call.1} parent=31 // pred_fallthru
          _
      $region32: #{tpu_custom_call.1} parent=5 // pred_fallthru
        _
      %p966 = scmp.le.s32.totalorder 2, %s12
      // Predicated region
      $region41: #{tpu_custom_call.1} parent=5 // pred_check
        %p967 = pneg %p966
      $region42: #{tpu_custom_call.1} parent=5 // pred_check_branch
        %969 = sbr.rel (%p967) target = $region44
      $region43: #{tpu_custom_call.1} parent=5 // pred_region
        %s970 = ssub.s32 %s12, 2
        // Predicated region
        $region45: #{tpu_custom_call.1} parent=43 // pred_check
          %p971 = pneg %p109
        $region46: #{tpu_custom_call.1} parent=43 // pred_check_branch
          %973 = sbr.rel (%p971) target = $region48
        $region47: #{tpu_custom_call.1} parent=43 // pred_region
          %p974 = scmp.lt.s32.totalorder %s18, 1
          %s975 = scalar_select %p974, %s18, 1
          %s976 = smul.addr %s975, 4
          %s977 = smul.addr %s976, 8
          %s978 = scalar_lea.vmem %s3, %s977
        $region48: #{tpu_custom_call.1} parent=43 // pred_fallthru
          _
      $region44: #{tpu_custom_call.1} parent=5 // pred_fallthru
        _
    $region6: #{tpu_custom_call.1} parent=1 // loop_footer
      %s16 = sadd.s32 1, %s12
    $region7: #{tpu_custom_call.1} parent=1 // loop_footer_branch
      %11 = sbr.rel target = $region3
    $region8: #{tpu_custom_call.1} parent=1 // loop_exit
      _
    %979 = vsyncpa [#allocation3], 1
    %s980 = scalar_lea.sflag [#allocation3], 1
    %981 = vsyncpa %s980, 1

</llo_original>
